<compile_context>
chip_gen: v7x
topology: tpu7x:2x2x1
jax: 0.10.0
libtpu: 0.0.40
codegen_flags: <defaults>
</compile_context>

<pallas_src>
import functools

import jax
import jax.numpy as jnp
from jax.experimental import pallas as pl
from jax.experimental.pallas import tpu as pltpu

NEG_SLOPE = 0.01  # torch.nn.functional.leaky_relu default negative_slope


def _round_up(x: int, m: int) -> int:
    return ((x + m - 1) // m) * m


def _mlpn_kernel(nlayers, x_ref, w_ref, b_ref, out_ref):
    """x_ref: (TM, D)   w_ref: (nlayers, D, D)   b_ref: (nlayers, 1, D)."""
    h = x_ref[...]  # f32 (TM, D)
    for i in range(nlayers):
        # Weights are zero-padded to (D, D); padded rows/cols contribute 0,
        # so the padded matmul is exactly the un-padded one.
        h = jnp.dot(h, w_ref[i], preferred_element_type=jnp.float32) + b_ref[i]
        if i < nlayers - 1:
            # leaky_relu: identical to where(h>0, h, s*h) for 0 < s < 1,
            # but lowers to mul+max (fewer VALU slots).
            h = jnp.maximum(h, NEG_SLOPE * h)
            # TODO(synk): Dropout(0.1) in train mode not implemented; in eval
            # mode (inference) it is the identity, which is what we compute.
    out_ref[...] = h.astype(out_ref.dtype)


def mlpn_forward(x, weights, biases, *, tm=None):
    """Fused MLPN forward pass as a single batch-tiled Pallas kernel.

    x:       (B, nin) float32
    weights: list of (in_i, out_i) float32 arrays (already transposed from
             the PyTorch (out, in) convention).
    biases:  list of (out_i,) float32 arrays.
    """
    nlayers = len(weights)
    B, nin = x.shape
    nout = weights[-1].shape[1]

    # Lane-pad every feature dimension to a common multiple of 128 so all
    # loads/stores and MXU operands are full-lane (no masked partial stores).
    dims = [nin] + [w.shape[1] for w in weights]
    D = _round_up(max(dims + [128]), 128)

    # Pack all parameters into two contiguous, zero-padded slabs (held
    # resident in VMEM across the whole batch grid).
    w_slab = jnp.zeros((nlayers, D, D), jnp.float32)
    b_slab = jnp.zeros((nlayers, 1, D), jnp.float32)
    for i, (w, b) in enumerate(zip(weights, biases)):
        w_slab = w_slab.at[i, : w.shape[0], : w.shape[1]].set(w.astype(jnp.float32))
        b_slab = b_slab.at[i, 0, : b.shape[0]].set(b.astype(jnp.float32))
    # NOTE: on v6e/v7x the matmul could feed bf16 operands to the MXU (keep
    # f32 accumulation via preferred_element_type); kept f32 here for exact
    # parity with the reference at these tiny shapes.

    # Batch tiling: big tiles amortize per-step overhead; cap at 512 rows
    # (f32) which keeps 2x double-buffered (TM x D in + TM x D out) plus the
    # parameter slabs comfortably under the 32 MiB scoped VMEM default on
    # every generation (incl. v7x's 64 MiB physical VMEM).
    if tm is None:
        tm = min(512, _round_up(B, 8))
    B_pad = _round_up(B, tm)
    x_pad = jnp.zeros((B_pad, D), jnp.float32).at[:B, :nin].set(x.astype(jnp.float32))

    grid = (B_pad // tm,)

    kernel = functools.partial(_mlpn_kernel, nlayers)

    out_pad = pl.pallas_call(
        kernel,
        out_shape=jax.ShapeDtypeStruct((B_pad, D), jnp.float32),
        grid=grid,
        in_specs=[
            pl.BlockSpec((tm, D), lambda i: (i, 0)),            # x tile
            pl.BlockSpec((nlayers, D, D), lambda i: (0, 0, 0)),  # resident W slab
            pl.BlockSpec((nlayers, 1, D), lambda i: (0, 0, 0)),  # resident bias slab
        ],
        out_specs=pl.BlockSpec((tm, D), lambda i: (i, 0)),
        compiler_params=pltpu.CompilerParams(
            # Batch tiles are independent -> shard across both TCs on v7x.
            dimension_semantics=("parallel",),
            vmem_limit_bytes=32 * 1024 * 1024,
        ),
    )(x_pad, w_slab, b_slab)

    return out_pad[:B, :nout]


def init_mlpn_params(key, nin, nout, nunits, nlayers):
    """Deterministic init mimicking nn.Linear's uniform(-1/sqrt(fan_in), +)."""
    weights, biases = [], []
    for i in range(nlayers):
        d_in = nin if i == 0 else nunits
        d_out = nout if i == nlayers - 1 else nunits
        key, kw, kb = jax.random.split(key, 3)
        bound = 1.0 / jnp.sqrt(jnp.float32(d_in))
        # stored directly as (in, out) = transpose of the PyTorch (out, in)
        w = jax.random.uniform(kw, (d_in, d_out), jnp.float32, -bound, bound)
        b = jax.random.uniform(kb, (d_out,), jnp.float32, -bound, bound)
        weights.append(w)
        biases.append(b)
    return weights, biases


def mlpn_reference(x, weights, biases):
    """Pure-JAX reference of the same forward pass."""
    h = x
    nlayers = len(weights)
    for i in range(nlayers):
        h = h @ weights[i] + biases[i]
        if i < nlayers - 1:
            h = jnp.where(h > 0, h, NEG_SLOPE * h)
    return h


if __name__ == "__main__":
    # Small shapes consistent with the module: MLPN(nin=32, nout=16, nunits=32, nlayers=3)
    batch, nin, nunits, nout, nlayers = 8, 32, 32, 16, 3

    key = jax.random.PRNGKey(0)
    key, kx = jax.random.split(key)
    x = jax.random.normal(kx, (batch, nin), jnp.float32)

    weights, biases = init_mlpn_params(key, nin, nout, nunits, nlayers)

    out = mlpn_forward(x, weights, biases)
    out = jax.block_until_ready(out)

    ref = mlpn_reference(x, weights, biases)
    assert out.shape == (batch, nout)
    assert jnp.allclose(out, ref, atol=1e-5, rtol=1e-5), "mismatch vs reference"

    print("KERNEL_OK")
</pallas_src>

<mosaic_0001>
module attributes {stable_mosaic.version = 11 : i64} {
  func.func @_mlpn_kernel(%arg0: i32, %arg1: memref<8x128xf32, #tpu.memory_space<vmem>>, %arg2: memref<3x128x128xf32, #tpu.memory_space<vmem>>, %arg3: memref<3x1x128xf32, #tpu.memory_space<vmem>>, %arg4: memref<8x128xf32, #tpu.memory_space<vmem>>) attributes {dimension_semantics = [#tpu.dimension_semantics<parallel>], iteration_bounds = array<i64: 1>, scalar_prefetch = 0 : i64, scratch_operands = 0 : i64, tpu.core_type = #tpu.core_type<tc>, window_params = [{transform_indices = @transform_0, window_bounds = array<i64: 8, 128>}, {pipeline_mode = #tpu.pipeline_mode<synchronous>, transform_indices = @transform_1, window_bounds = array<i64: 3, 128, 128>}, {pipeline_mode = #tpu.pipeline_mode<synchronous>, transform_indices = @transform_2, window_bounds = array<i64: 3, 1, 128>}, {transform_indices = @transform_3, window_bounds = array<i64: 8, 128>}]} {
    %c0 = arith.constant 0 : index
    %c0_0 = arith.constant 0 : index
    %0 = vector.load %arg1[%c0, %c0_0] : memref<8x128xf32, #tpu.memory_space<vmem>>, vector<8x128xf32>
    %c0_1 = arith.constant 0 : index
    %c0_2 = arith.constant 0 : index
    %c0_3 = arith.constant 0 : index
    %1 = vector.load %arg2[%c0_1, %c0_2, %c0_3] : memref<3x128x128xf32, #tpu.memory_space<vmem>>, vector<1x128x128xf32>
    %2 = vector.shape_cast %1 : vector<1x128x128xf32> to vector<128x128xf32>
    %cst = arith.constant dense<0.000000e+00> : vector<8x128xf32>
    %3 = tpu.matmul %0, %2, %cst {dimension_numbers = #tpu.dot_dimension_numbers<[1], [0], [0], [1], [0, 0, 1, 1], [], []>} : vector<8x128xf32>, vector<128x128xf32>, vector<8x128xf32> -> vector<8x128xf32>
    %c0_4 = arith.constant 0 : index
    %c0_5 = arith.constant 0 : index
    %c0_6 = arith.constant 0 : index
    %4 = vector.load %arg3[%c0_4, %c0_5, %c0_6] : memref<3x1x128xf32, #tpu.memory_space<vmem>>, vector<1x1x128xf32>
    %5 = vector.shape_cast %4 : vector<1x1x128xf32> to vector<1x128xf32>
    %6 = vector.broadcast %5 : vector<1x128xf32> to vector<8x128xf32>
    %7 = arith.addf %3, %6 : vector<8x128xf32>
    %cst_7 = arith.constant 0.00999999977 : f32
    %8 = vector.broadcast %cst_7 : f32 to vector<8x128xf32>
    %9 = arith.mulf %8, %7 : vector<8x128xf32>
    %10 = arith.maximumf %7, %9 : vector<8x128xf32>
    %c1 = arith.constant 1 : index
    %c0_8 = arith.constant 0 : index
    %c0_9 = arith.constant 0 : index
    %11 = vector.load %arg2[%c1, %c0_8, %c0_9] : memref<3x128x128xf32, #tpu.memory_space<vmem>>, vector<1x128x128xf32>
    %12 = vector.shape_cast %11 : vector<1x128x128xf32> to vector<128x128xf32>
    %cst_10 = arith.constant dense<0.000000e+00> : vector<8x128xf32>
    %13 = tpu.matmul %10, %12, %cst_10 {dimension_numbers = #tpu.dot_dimension_numbers<[1], [0], [0], [1], [0, 0, 1, 1], [], []>} : vector<8x128xf32>, vector<128x128xf32>, vector<8x128xf32> -> vector<8x128xf32>
    %c1_11 = arith.constant 1 : index
    %c0_12 = arith.constant 0 : index
    %c0_13 = arith.constant 0 : index
    %14 = vector.load %arg3[%c1_11, %c0_12, %c0_13] : memref<3x1x128xf32, #tpu.memory_space<vmem>>, vector<1x1x128xf32>
    %15 = vector.shape_cast %14 : vector<1x1x128xf32> to vector<1x128xf32>
    %16 = vector.broadcast %15 : vector<1x128xf32> to vector<8x128xf32>
    %17 = arith.addf %13, %16 : vector<8x128xf32>
    %cst_14 = arith.constant 0.00999999977 : f32
    %18 = vector.broadcast %cst_14 : f32 to vector<8x128xf32>
    %19 = arith.mulf %18, %17 : vector<8x128xf32>
    %20 = arith.maximumf %17, %19 : vector<8x128xf32>
    %c2 = arith.constant 2 : index
    %c0_15 = arith.constant 0 : index
    %c0_16 = arith.constant 0 : index
    %21 = vector.load %arg2[%c2, %c0_15, %c0_16] : memref<3x128x128xf32, #tpu.memory_space<vmem>>, vector<1x128x128xf32>
    %22 = vector.shape_cast %21 : vector<1x128x128xf32> to vector<128x128xf32>
    %cst_17 = arith.constant dense<0.000000e+00> : vector<8x128xf32>
    %23 = tpu.matmul %20, %22, %cst_17 {dimension_numbers = #tpu.dot_dimension_numbers<[1], [0], [0], [1], [0, 0, 1, 1], [], []>} : vector<8x128xf32>, vector<128x128xf32>, vector<8x128xf32> -> vector<8x128xf32>
    %c2_18 = arith.constant 2 : index
    %c0_19 = arith.constant 0 : index
    %c0_20 = arith.constant 0 : index
    %24 = vector.load %arg3[%c2_18, %c0_19, %c0_20] : memref<3x1x128xf32, #tpu.memory_space<vmem>>, vector<1x1x128xf32>
    %25 = vector.shape_cast %24 : vector<1x1x128xf32> to vector<1x128xf32>
    %26 = vector.broadcast %25 : vector<1x128xf32> to vector<8x128xf32>
    %27 = arith.addf %23, %26 : vector<8x128xf32>
    %c0_21 = arith.constant 0 : index
    %c0_22 = arith.constant 0 : index
    %28 = vector.load %arg4[%c0_21, %c0_22] : memref<8x128xf32, #tpu.memory_space<vmem>>, vector<8x128xf32>
    tpu.vector_store %arg4[%c0_21, %c0_22], %27 {strides = array<i32>} : memref<8x128xf32, #tpu.memory_space<vmem>>, vector<8x128xf32>,
    return
  }
  func.func @transform_0(%arg0: i32) -> (i32, i32) {
    %c0_i32 = arith.constant 0 : i32
    %c0_i32_0 = arith.constant 0 : i32
    return %arg0, %c0_i32 : i32, i32
  }
  func.func @transform_1(%arg0: i32) -> (i32, i32, i32) {
    %c0_i32 = arith.constant 0 : i32
    %c0_i32_0 = arith.constant 0 : i32
    %c0_i32_1 = arith.constant 0 : i32
    %c0_i32_2 = arith.constant 0 : i32
    return %c0_i32, %c0_i32_0, %c0_i32_1 : i32, i32, i32
  }
  func.func @transform_2(%arg0: i32) -> (i32, i32, i32) {
    %c0_i32 = arith.constant 0 : i32
    %c0_i32_0 = arith.constant 0 : i32
    %c0_i32_1 = arith.constant 0 : i32
    %c0_i32_2 = arith.constant 0 : i32
    return %c0_i32, %c0_i32_0, %c0_i32_1 : i32, i32, i32
  }
  func.func @transform_3(%arg0: i32) -> (i32, i32) {
    %c0_i32 = arith.constant 0 : i32
    %c0_i32_0 = arith.constant 0 : i32
    return %arg0, %c0_i32 : i32, i32
  }
}

</mosaic_0001>

<llo_original>
// kernel: tpu_custom_call.1
$region0: #{tpu_custom_call.1}
  #allocation0 [shape = 'u32[]', space=smem, size = 0x4, offset = 0x4, fixed_abs, tag = 'smem constant byte address 0x4 - core index']
  #allocation1 [shape = 'u32[144,128]{1,0:T(1,128)}', space=vmem, size = 0x12000, scoped, tag = 'internal scratch']
  %s0 = inlined_call_operand.hbm [shape: f32[8,128], index: 0, kind: input, shape index: {}]
  %s1 = inlined_call_operand.hbm [shape: f32[3,128,128], index: 1, kind: input, shape index: {}]
  %s2 = inlined_call_operand.vmem [shape: f32[3,1,128], index: 2, kind: input, shape index: {}]
  %s3 = inlined_call_operand.hbm [shape: f32[8,128], index: 3, kind: output, shape index: {}]
  %s4 = sld [smem:[#allocation0]]
  $region30: #{tpu_custom_call.1} parent=0
    _
  %s6 = ssub.s32 1, %s4
  %s7 = scalar_select 0, %s6, %s4
  $region1: #{tpu_custom_call.1} parent=0
    #allocation2 [shape = 'u8[4096]{0}', space=vmem, size = 0x1000, scoped, tag = 'input window, operand 0, single buffered']
    #allocation3 [shape = 's32[1]{0}', space=sflag, size = 0x4, scoped, tag = 'scoped memory for tpu_custom_call.1']
    #allocation4 [shape = 's32[1]{0}', space=sflag, size = 0x4, scoped, tag = 'scoped memory for tpu_custom_call.1']
    #allocation5 [shape = 'u8[196608]{0}', space=vmem, size = 0x30000, scoped, tag = 'input window, operand 1, single buffered']
    #allocation6 [shape = 's32[1]{0}', space=sflag, size = 0x4, scoped, tag = 'scoped memory for tpu_custom_call.1']
    #allocation7 [shape = 'u8[4096]{0}', space=vmem, size = 0x1000, scoped, tag = 'output window, operand 0, single buffered']
    %8 = vsyncpa [#allocation3], 0
    %9 = vsyncpa [#allocation6], 0
    %10 = vsyncpa [#allocation4], 0
    // Predicated region
    $region2: #{tpu_custom_call.1} parent=1 // pred_check
      _
    $region3: #{tpu_custom_call.1} parent=1 // pred_check_branch
      %12 = sbr.rel (0) target = $region5
    $region4: #{tpu_custom_call.1} parent=1 // pred_region
      %s14 = ssub.s32 128, 128
      %15 = vsyncadd [#allocation3], %s14
      %s17 = sshll.u32 [#allocation2], 4
      %s18 = int_to_ptr.vmem [resolvable:$true] %s17
      %20 = dma.hbm_to_vmem [thread:$0]  %s0, 128, %s18, [#allocation3]
    $region5: #{tpu_custom_call.1} parent=1 // pred_fallthru
      _
    // Predicated region
    $region6: #{tpu_custom_call.1} parent=1 // pred_check
      _
    $region7: #{tpu_custom_call.1} parent=1 // pred_check_branch
      %22 = sbr.rel (0) target = $region9
    $region8: #{tpu_custom_call.1} parent=1 // pred_region
      %s24 = ssub.s32 6144, 6144
      %25 = vsyncadd [#allocation6], %s24
      %s26 = sshll.u32 [#allocation5], 4
      %s27 = int_to_ptr.vmem [resolvable:$true] %s26
      %32 = dma.hbm_to_vmem [thread:$0]  %s1, 6144, %s27, [#allocation6], 128, 128, 8
    $region9: #{tpu_custom_call.1} parent=1 // pred_fallthru
      _
    // Predicated region
    $region10: #{tpu_custom_call.1} parent=1 // pred_check
      _
    $region11: #{tpu_custom_call.1} parent=1 // pred_check_branch
      %34 = sbr.rel (0) target = $region13
    $region12: #{tpu_custom_call.1} parent=1 // pred_region
      _
    $region13: #{tpu_custom_call.1} parent=1 // pred_fallthru
      _
    // Predicated region
    $region14: #{tpu_custom_call.1} parent=1 // pred_check
      _
    $region15: #{tpu_custom_call.1} parent=1 // pred_check_branch
      %36 = sbr.rel (0) target = $region17
    $region16: #{tpu_custom_call.1} parent=1 // pred_region
      %37 = dma.done [#allocation3], 128
    $region17: #{tpu_custom_call.1} parent=1 // pred_fallthru
      _
    // Predicated region
    $region18: #{tpu_custom_call.1} parent=1 // pred_check
      _
    $region19: #{tpu_custom_call.1} parent=1 // pred_check_branch
      %39 = sbr.rel (0) target = $region21
    $region20: #{tpu_custom_call.1} parent=1 // pred_region
      %40 = dma.done [#allocation6], 6144
    $region21: #{tpu_custom_call.1} parent=1 // pred_fallthru
      _
    %v41 = vld [vmem:[#allocation2] sm:$0xff]
    %v42 = vld [vmem:[#allocation5] sm:$0xff]
    %v43 = vld [vmem:[#allocation5 + $0x8] sm:$0xff]
    %v44 = vld [vmem:[#allocation5 + $0x10] sm:$0xff]
    %v45 = vld [vmem:[#allocation5 + $0x18] sm:$0xff]
    %v46 = vld [vmem:[#allocation5 + $0x20] sm:$0xff]
    %v47 = vld [vmem:[#allocation5 + $0x28] sm:$0xff]
    %v48 = vld [vmem:[#allocation5 + $0x30] sm:$0xff]
    %v49 = vld [vmem:[#allocation5 + $0x38] sm:$0xff]
    %v50 = vld [vmem:[#allocation5 + $0x40] sm:$0xff]
    %v51 = vld [vmem:[#allocation5 + $0x48] sm:$0xff]
    %v52 = vld [vmem:[#allocation5 + $0x50] sm:$0xff]
    %v53 = vld [vmem:[#allocation5 + $0x58] sm:$0xff]
    %v54 = vld [vmem:[#allocation5 + $0x60] sm:$0xff]
    %v55 = vld [vmem:[#allocation5 + $0x68] sm:$0xff]
    %v56 = vld [vmem:[#allocation5 + $0x70] sm:$0xff]
    %v57 = vld [vmem:[#allocation5 + $0x78] sm:$0xff]
    %v58 = vld [vmem:[%s2] sm:$0x1]
    %v60 = vlaneseq
    %v61 = vshrl.u32 %v60, 7
    %v62 = vsub.s32 0, %v61
    %v63 = vrot.slane %v58, %v62
    %65 = vmatprep.subr.mxu0 0.0
    %66 = vmatpush1.msra.mxu0 %v42
    %67 = vmatprep.subr.mxu0 0.0
    %68 = vmatpush1.msra.mxu0 %v43
    %69 = vmatprep.subr.mxu0 0.0
    %70 = vmatpush1.msra.mxu0 %v44
    %71 = vmatprep.subr.mxu0 0.0
    %72 = vmatpush1.msra.mxu0 %v45
    %73 = vmatprep.subr.mxu0 0.0
    %74 = vmatpush1.msra.mxu0 %v46
    %75 = vmatprep.subr.mxu0 0.0
    %76 = vmatpush1.msra.mxu0 %v47
    %77 = vmatprep.subr.mxu0 0.0
    %78 = vmatpush1.msra.mxu0 %v48
    %79 = vmatprep.subr.mxu0 0.0
    %80 = vmatpush1.msra.mxu0 %v49
    %81 = vmatprep.subr.mxu0 0.0
    %82 = vmatpush1.msra.mxu0 %v50
    %83 = vmatprep.subr.mxu0 0.0
    %84 = vmatpush1.msra.mxu0 %v51
    %85 = vmatprep.subr.mxu0 0.0
    %86 = vmatpush1.msra.mxu0 %v52
    %87 = vmatprep.subr.mxu0 0.0
    %88 = vmatpush1.msra.mxu0 %v53
    %89 = vmatprep.subr.mxu0 0.0
    %90 = vmatpush1.msra.mxu0 %v54
    %91 = vmatprep.subr.mxu0 0.0
    %92 = vmatpush1.msra.mxu0 %v55
    %93 = vmatprep.subr.mxu0 0.0
    %94 = vmatpush1.msra.mxu0 %v56
    %95 = vmatprep.subr.mxu0 0.0
    %96 = vmatpush1.msra.mxu0 %v57
    %97 = vmatprep.subr.mxu0 0.0
    %98 = vmatpush1.msra.mxu0 0.0
    %99 = vmatprep.subr.mxu0 0.0
    %100 = vmatpush1.msra.mxu0 0.0
    %101 = vmatprep.subr.mxu0 0.0
    %102 = vmatpush1.msra.mxu0 0.0
    %103 = vmatprep.subr.mxu0 0.0
    %104 = vmatpush1.msra.mxu0 0.0
    %105 = vmatprep.subr.mxu0 0.0
    %106 = vmatpush1.msra.mxu0 0.0
    %107 = vmatprep.subr.mxu0 0.0
    %108 = vmatpush1.msra.mxu0 0.0
    %109 = vmatprep.subr.mxu0 0.0
    %110 = vmatpush1.msra.mxu0 0.0
    %111 = vmatprep.subr.mxu0 0.0
    %112 = vmatpush1.msra.mxu0 0.0
    %113 = vmatprep.subr.mxu0 0.0
    %114 = vmatpush1.msra.mxu0 0.0
    %115 = vmatprep.subr.mxu0 0.0
    %116 = vmatpush1.msra.mxu0 0.0
    %117 = vmatprep.subr.mxu0 0.0
    %118 = vmatpush1.msra.mxu0 0.0
    %119 = vmatprep.subr.mxu0 0.0
    %120 = vmatpush1.msra.mxu0 0.0
    %121 = vmatprep.subr.mxu0 0.0
    %122 = vmatpush1.msra.mxu0 0.0
    %123 = vmatprep.subr.mxu0 0.0
    %124 = vmatpush1.msra.mxu0 0.0
    %125 = vmatprep.subr.mxu0 0.0
    %126 = vmatpush1.msra.mxu0 0.0
    %127 = vmatprep.subr.mxu0 0.0
    %128 = vmatpush1.msra.mxu0 0.0
    %129 = vmatprep.mubr.f32.mxu0 0.0
    %130 = vmatmul.mubr.f32.gmra.mrb[0].mxu0 %v41
    %v131 = vpop.f32.mrb[0].mxu0
    %v132 = vadd.f32 %v63, %v131
    %v133 = vpop.f32.mrb[0].mxu0
    %134 = vdwg.mxu0
    %v135 = vmul.f32 %v132, 0.01
    %v136 = vmax.f32 %v132, %v135
    %s137 = scalar_lea.vmem [#allocation5], 128
    %v138 = vld [vmem:[%s137] sm:$0xff]
    %v139 = vld [vmem:[%s137 + $0x8] sm:$0xff]
    %v140 = vld [vmem:[%s137 + $0x10] sm:$0xff]
    %v141 = vld [vmem:[%s137 + $0x18] sm:$0xff]
    %v142 = vld [vmem:[%s137 + $0x20] sm:$0xff]
    %v143 = vld [vmem:[%s137 + $0x28] sm:$0xff]
    %v144 = vld [vmem:[%s137 + $0x30] sm:$0xff]
    %v145 = vld [vmem:[%s137 + $0x38] sm:$0xff]
    %v146 = vld [vmem:[%s137 + $0x40] sm:$0xff]
    %v147 = vld [vmem:[%s137 + $0x48] sm:$0xff]
    %v148 = vld [vmem:[%s137 + $0x50] sm:$0xff]
    %v149 = vld [vmem:[%s137 + $0x58] sm:$0xff]
    %v150 = vld [vmem:[%s137 + $0x60] sm:$0xff]
    %v151 = vld [vmem:[%s137 + $0x68] sm:$0xff]
    %v152 = vld [vmem:[%s137 + $0x70] sm:$0xff]
    %v153 = vld [vmem:[%s137 + $0x78] sm:$0xff]
    %s154 = scalar_lea.vmem %s2, 1
    %v155 = vld [vmem:[%s154] sm:$0x1]
    %v157 = vlaneseq
    %v158 = vshrl.u32 %v157, 7
    %v159 = vsub.s32 0, %v158
    %v160 = vrot.slane %v155, %v159
    %162 = vmatprep.subr.mxu0 0.0
    %163 = vmatpush1.msra.mxu0 %v138
    %164 = vmatprep.subr.mxu0 0.0
    %165 = vmatpush1.msra.mxu0 %v139
    %166 = vmatprep.subr.mxu0 0.0
    %167 = vmatpush1.msra.mxu0 %v140
    %168 = vmatprep.subr.mxu0 0.0
    %169 = vmatpush1.msra.mxu0 %v141
    %170 = vmatprep.subr.mxu0 0.0
    %171 = vmatpush1.msra.mxu0 %v142
    %172 = vmatprep.subr.mxu0 0.0
    %173 = vmatpush1.msra.mxu0 %v143
    %174 = vmatprep.subr.mxu0 0.0
    %175 = vmatpush1.msra.mxu0 %v144
    %176 = vmatprep.subr.mxu0 0.0
    %177 = vmatpush1.msra.mxu0 %v145
    %178 = vmatprep.subr.mxu0 0.0
    %179 = vmatpush1.msra.mxu0 %v146
    %180 = vmatprep.subr.mxu0 0.0
    %181 = vmatpush1.msra.mxu0 %v147
    %182 = vmatprep.subr.mxu0 0.0
    %183 = vmatpush1.msra.mxu0 %v148
    %184 = vmatprep.subr.mxu0 0.0
    %185 = vmatpush1.msra.mxu0 %v149
    %186 = vmatprep.subr.mxu0 0.0
    %187 = vmatpush1.msra.mxu0 %v150
    %188 = vmatprep.subr.mxu0 0.0
    %189 = vmatpush1.msra.mxu0 %v151
    %190 = vmatprep.subr.mxu0 0.0
    %191 = vmatpush1.msra.mxu0 %v152
    %192 = vmatprep.subr.mxu0 0.0
    %193 = vmatpush1.msra.mxu0 %v153
    %194 = vmatprep.subr.mxu0 0.0
    %195 = vmatpush1.msra.mxu0 0.0
    %196 = vmatprep.subr.mxu0 0.0
    %197 = vmatpush1.msra.mxu0 0.0
    %198 = vmatprep.subr.mxu0 0.0
    %199 = vmatpush1.msra.mxu0 0.0
    %200 = vmatprep.subr.mxu0 0.0
    %201 = vmatpush1.msra.mxu0 0.0
    %202 = vmatprep.subr.mxu0 0.0
    %203 = vmatpush1.msra.mxu0 0.0
    %204 = vmatprep.subr.mxu0 0.0
    %205 = vmatpush1.msra.mxu0 0.0
    %206 = vmatprep.subr.mxu0 0.0
    %207 = vmatpush1.msra.mxu0 0.0
    %208 = vmatprep.subr.mxu0 0.0
    %209 = vmatpush1.msra.mxu0 0.0
    %210 = vmatprep.subr.mxu0 0.0
    %211 = vmatpush1.msra.mxu0 0.0
    %212 = vmatprep.subr.mxu0 0.0
    %213 = vmatpush1.msra.mxu0 0.0
    %214 = vmatprep.subr.mxu0 0.0
    %215 = vmatpush1.msra.mxu0 0.0
    %216 = vmatprep.subr.mxu0 0.0
    %217 = vmatpush1.msra.mxu0 0.0
    %218 = vmatprep.subr.mxu0 0.0
    %219 = vmatpush1.msra.mxu0 0.0
    %220 = vmatprep.subr.mxu0 0.0
    %221 = vmatpush1.msra.mxu0 0.0
    %222 = vmatprep.subr.mxu0 0.0
    %223 = vmatpush1.msra.mxu0 0.0
    %224 = vmatprep.subr.mxu0 0.0
    %225 = vmatpush1.msra.mxu0 0.0
    %226 = vmatprep.mubr.f32.mxu0 0.0
    %227 = vmatmul.mubr.f32.gmra.mrb[0].mxu0 %v136
    %v228 = vpop.f32.mrb[0].mxu0
    %v229 = vadd.f32 %v160, %v228
    %v230 = vpop.f32.mrb[0].mxu0
    %231 = vdwg.mxu0
    %v232 = vmul.f32 %v229, 0.01
    %v233 = vmax.f32 %v229, %v232
    %s234 = scalar_lea.vmem [#allocation5], 256
    %v235 = vld [vmem:[%s234] sm:$0xff]
    %v236 = vld [vmem:[%s234 + $0x8] sm:$0xff]
    %v237 = vld [vmem:[%s234 + $0x10] sm:$0xff]
    %v238 = vld [vmem:[%s234 + $0x18] sm:$0xff]
    %v239 = vld [vmem:[%s234 + $0x20] sm:$0xff]
    %v240 = vld [vmem:[%s234 + $0x28] sm:$0xff]
    %v241 = vld [vmem:[%s234 + $0x30] sm:$0xff]
    %v242 = vld [vmem:[%s234 + $0x38] sm:$0xff]
    %v243 = vld [vmem:[%s234 + $0x40] sm:$0xff]
    %v244 = vld [vmem:[%s234 + $0x48] sm:$0xff]
    %v245 = vld [vmem:[%s234 + $0x50] sm:$0xff]
    %v246 = vld [vmem:[%s234 + $0x58] sm:$0xff]
    %v247 = vld [vmem:[%s234 + $0x60] sm:$0xff]
    %v248 = vld [vmem:[%s234 + $0x68] sm:$0xff]
    %v249 = vld [vmem:[%s234 + $0x70] sm:$0xff]
    %v250 = vld [vmem:[%s234 + $0x78] sm:$0xff]
    %s251 = scalar_lea.vmem %s2, 2
    %v252 = vld [vmem:[%s251] sm:$0x1]
    %v254 = vlaneseq
    %v255 = vshrl.u32 %v254, 7
    %v256 = vsub.s32 0, %v255
    %v257 = vrot.slane %v252, %v256
    %259 = vmatprep.subr.mxu0 0.0
    %260 = vmatpush1.msra.mxu0 %v235
    %261 = vmatprep.subr.mxu0 0.0
    %262 = vmatpush1.msra.mxu0 %v236
    %263 = vmatprep.subr.mxu0 0.0
    %264 = vmatpush1.msra.mxu0 %v237
    %265 = vmatprep.subr.mxu0 0.0
    %266 = vmatpush1.msra.mxu0 %v238
    %267 = vmatprep.subr.mxu0 0.0
    %268 = vmatpush1.msra.mxu0 %v239
    %269 = vmatprep.subr.mxu0 0.0
    %270 = vmatpush1.msra.mxu0 %v240
    %271 = vmatprep.subr.mxu0 0.0
    %272 = vmatpush1.msra.mxu0 %v241
    %273 = vmatprep.subr.mxu0 0.0
    %274 = vmatpush1.msra.mxu0 %v242
    %275 = vmatprep.subr.mxu0 0.0
    %276 = vmatpush1.msra.mxu0 %v243
    %277 = vmatprep.subr.mxu0 0.0
    %278 = vmatpush1.msra.mxu0 %v244
    %279 = vmatprep.subr.mxu0 0.0
    %280 = vmatpush1.msra.mxu0 %v245
    %281 = vmatprep.subr.mxu0 0.0
    %282 = vmatpush1.msra.mxu0 %v246
    %283 = vmatprep.subr.mxu0 0.0
    %284 = vmatpush1.msra.mxu0 %v247
    %285 = vmatprep.subr.mxu0 0.0
    %286 = vmatpush1.msra.mxu0 %v248
    %287 = vmatprep.subr.mxu0 0.0
    %288 = vmatpush1.msra.mxu0 %v249
    %289 = vmatprep.subr.mxu0 0.0
    %290 = vmatpush1.msra.mxu0 %v250
    %291 = vmatprep.subr.mxu0 0.0
    %292 = vmatpush1.msra.mxu0 0.0
    %293 = vmatprep.subr.mxu0 0.0
    %294 = vmatpush1.msra.mxu0 0.0
    %295 = vmatprep.subr.mxu0 0.0
    %296 = vmatpush1.msra.mxu0 0.0
    %297 = vmatprep.subr.mxu0 0.0
    %298 = vmatpush1.msra.mxu0 0.0
    %299 = vmatprep.subr.mxu0 0.0
    %300 = vmatpush1.msra.mxu0 0.0
    %301 = vmatprep.subr.mxu0 0.0
    %302 = vmatpush1.msra.mxu0 0.0
    %303 = vmatprep.subr.mxu0 0.0
    %304 = vmatpush1.msra.mxu0 0.0
    %305 = vmatprep.subr.mxu0 0.0
    %306 = vmatpush1.msra.mxu0 0.0
    %307 = vmatprep.subr.mxu0 0.0
    %308 = vmatpush1.msra.mxu0 0.0
    %309 = vmatprep.subr.mxu0 0.0
    %310 = vmatpush1.msra.mxu0 0.0
    %311 = vmatprep.subr.mxu0 0.0
    %312 = vmatpush1.msra.mxu0 0.0
    %313 = vmatprep.subr.mxu0 0.0
    %314 = vmatpush1.msra.mxu0 0.0
    %315 = vmatprep.subr.mxu0 0.0
    %316 = vmatpush1.msra.mxu0 0.0
    %317 = vmatprep.subr.mxu0 0.0
    %318 = vmatpush1.msra.mxu0 0.0
    %319 = vmatprep.subr.mxu0 0.0
    %320 = vmatpush1.msra.mxu0 0.0
    %321 = vmatprep.subr.mxu0 0.0
    %322 = vmatpush1.msra.mxu0 0.0
    %323 = vmatprep.mubr.f32.mxu0 0.0
    %324 = vmatmul.mubr.f32.gmra.mrb[0].mxu0 %v233
    %v325 = vpop.f32.mrb[0].mxu0
    %v326 = vadd.f32 %v257, %v325
    %v327 = vpop.f32.mrb[0].mxu0
    %328 = vdwg.mxu0
    %329 = vst [vmem:[#allocation7] sm:$0xff] %v326
    // Predicated region
    $region22: #{tpu_custom_call.1} parent=1 // pred_check
      _
    $region23: #{tpu_custom_call.1} parent=1 // pred_check_branch
      %331 = sbr.rel (0) target = $region25
    $region24: #{tpu_custom_call.1} parent=1 // pred_region
      %s333 = ssub.s32 128, 128
      %334 = vsyncadd [#allocation4], %s333
      %s336 = sshll.u32 [#allocation7], 4
      %s337 = int_to_ptr.vmem [resolvable:$true] %s336
      %339 = dma.vmem_to_hbm [thread:$0]  %s337, 128, %s3, [#allocation4]
    $region25: #{tpu_custom_call.1} parent=1 // pred_fallthru
      _
    // Predicated region
    $region26: #{tpu_custom_call.1} parent=1 // pred_check
      _
    $region27: #{tpu_custom_call.1} parent=1 // pred_check_branch
      %341 = sbr.rel (0) target = $region29
    $region28: #{tpu_custom_call.1} parent=1 // pred_region
      %342 = dma.done [#allocation4], 128
    $region29: #{tpu_custom_call.1} parent=1 // pred_fallthru
      _
    %343 = vsyncpa [#allocation3], 1
    %344 = vsyncpa [#allocation6], 1
    %345 = vsyncpa [#allocation4], 1

</llo_original>
